<compile_context>
chip_gen: v5e
topology: v5e:2x2
jax: 0.10.0
libtpu: 0.0.40
codegen_flags: <defaults>
</compile_context>

<pallas_src>
import numpy as np
import jax
import jax.numpy as jnp
from jax import lax
from jax.experimental import pallas as pl
from jax.experimental.pallas import tpu as pltpu

K = 5     # conv kernel size
PAD = 2   # 'same' padding for 5x5, stride 1


def encoder_kernel(x_ref, t1_ref, b1_ref, t2_ref, b2_ref, out_ref):
    NB, Hp, Wp = x_ref.shape
    H1, W1 = Hp - 2 * PAD, Wp - 2 * PAD          # conv1 output spatial dims
    H2, W2 = H1 // 2, W1 // 2                    # pool1 output spatial dims
    H3, W3 = H2 // 2, W2 // 2                    # pool2 output spatial dims
    C1 = b1_ref.shape[1] // W2                   # 16
    C2 = b2_ref.shape[1] // W3                   # 8

    x = x_ref[...]                               # (NB, Hp, Wp)

    # ---- conv1: one banded matmul.  X1 rows = (n, i); lanes = (kh, wp). ----
    slabs1 = [x[:, kh:kh + H1, :].reshape(NB * H1, Wp) for kh in range(K)]
    x1 = jnp.concatenate(slabs1, axis=-1)                       # (NB*H1, K*Wp)
    y1 = jnp.dot(x1, t1_ref[...],
                 preferred_element_type=jnp.float32)            # (NB*H1, 2*W2*C1)

    # ---- maxpool1 (2x2) + bias + ReLU (pool commutes with +bias / relu) ----
    y1 = y1.reshape(NB * H2, 2, 2 * W2 * C1)
    y1 = jnp.maximum(y1[:, 0, :], y1[:, 1, :])                  # pool over rows
    half1 = W2 * C1
    p1 = jnp.maximum(y1[:, :half1], y1[:, half1:])              # pool over cols
    p1 = jnp.maximum(p1 + b1_ref[...], 0.0)                     # (NB*H2, W2*C1)

    # ---- conv2: one banded matmul (contraction K = 5*W2*C1). ----
    p1 = p1.reshape(NB, H2, W2 * C1)
    zpad = jnp.zeros((NB, PAD, W2 * C1), jnp.float32)
    p1p = jnp.concatenate([zpad, p1, zpad], axis=1)             # (NB, H2+4, W2*C1)
    slabs2 = [p1p[:, kh:kh + H2, :].reshape(NB * H2, W2 * C1) for kh in range(K)]
    x2 = jnp.concatenate(slabs2, axis=-1)                       # (NB*H2, K*W2*C1)
    y2 = jnp.dot(x2, t2_ref[...],
                 preferred_element_type=jnp.float32)            # (NB*H2, 2*W3*C2)

    # ---- maxpool2 (2x2) + bias + ReLU ----
    y2 = y2.reshape(NB * H3, 2, 2 * W3 * C2)
    y2 = jnp.maximum(y2[:, 0, :], y2[:, 1, :])
    half2 = W3 * C2
    q = jnp.maximum(y2[:, :half2], y2[:, half2:])
    q = jnp.maximum(q + b2_ref[...], 0.0)                       # (NB*H3, W3*C2)

    # ---- lane-dense output: (NB, H3*W3*C2) ----
    q = q.reshape(NB, H3, W3 * C2)
    out_ref[...] = jnp.concatenate([q[:, i, :] for i in range(H3)], axis=-1)


def _build_banded_weights(w1, b1, w2, b2, Wp, W2, W3, C1, C2):
    """Wrapper-side weight glue: banded (Toeplitz) matrices + tiled biases."""
    # T1: (K*Wp, 2*W2*C1); T1[kh*Wp+wp, dj*W2*C1 + j2*C1 + c] = w1[c,0,kh,wp-(2*j2+dj)]
    w1_k = jnp.transpose(w1[:, 0, :, :], (1, 2, 0))             # (kh, kw, c)
    kh = np.arange(K).reshape(K, 1, 1, 1, 1)
    wp = np.arange(Wp).reshape(1, Wp, 1, 1, 1)
    dj = np.arange(2).reshape(1, 1, 2, 1, 1)
    j2 = np.arange(W2).reshape(1, 1, 1, W2, 1)
    cc = np.arange(C1).reshape(1, 1, 1, 1, C1)
    kw = wp - (2 * j2 + dj)
    valid = (kw >= 0) & (kw < K)
    t1 = jnp.where(jnp.asarray(valid),
                   w1_k[kh, np.clip(kw, 0, K - 1), cc],
                   0.0).astype(jnp.float32).reshape(K * Wp, 2 * W2 * C1)

    # T2: (K*W2*C1, 2*W3*C2);
    # T2[kh*W2*C1 + wq*C1 + ci, dj*W3*C2 + j3*C2 + co] = w2[co,ci,kh, wq+PAD-(2*j3+dj)]
    w2_k = jnp.transpose(w2, (2, 3, 1, 0))                      # (kh, kw, ci, co)
    kh = np.arange(K).reshape(K, 1, 1, 1, 1, 1)
    wq = np.arange(W2).reshape(1, W2, 1, 1, 1, 1)
    ci = np.arange(C1).reshape(1, 1, C1, 1, 1, 1)
    dj = np.arange(2).reshape(1, 1, 1, 2, 1, 1)
    j3 = np.arange(W3).reshape(1, 1, 1, 1, W3, 1)
    co = np.arange(C2).reshape(1, 1, 1, 1, 1, C2)
    kw = wq + PAD - (2 * j3 + dj)
    valid = (kw >= 0) & (kw < K)        # band clipping == 'same' zero-padding in W
    t2 = jnp.where(jnp.asarray(valid),
                   w2_k[kh, np.clip(kw, 0, K - 1), ci, co],
                   0.0).astype(jnp.float32).reshape(K * W2 * C1, 2 * W3 * C2)

    b1t = jnp.tile(b1, W2).reshape(1, W2 * C1).astype(jnp.float32)
    b2t = jnp.tile(b2, W3).reshape(1, W3 * C2).astype(jnp.float32)
    return t1, b1t, t2, b2t


def encoder_forward(x_nchw, w1, b1, w2, b2):
    """x_nchw: (N, 1, H, W) f32 -> (N, 8, H//4, W//4) f32 (NCHW)."""
    N, Cin, H, W = x_nchw.shape
    assert Cin == 1 and H % 4 == 0 and W % 4 == 0
    C1, C2 = w1.shape[0], w2.shape[0]            # 16, 8
    H2, W2 = H // 2, W // 2
    H3, W3 = H // 4, W // 4
    Hp, Wp = H + 2 * PAD, W + 2 * PAD

    # Glue: pad the network input in H/W, drop the singleton channel dim.
    xp = jnp.pad(x_nchw[:, 0, :, :], ((0, 0), (PAD, PAD), (PAD, PAD)))

    # Glue: banded weight matrices + tiled biases.
    t1, b1t, t2, b2t = _build_banded_weights(w1, b1, w2, b2, Wp, W2, W3, C1, C2)

    # Batch block: whole batch when small; multiple-of-8 divisor for big N.
    NB = N
    if N > 128:
        for cand in (128, 64, 32, 16, 8):
            if N % cand == 0:
                NB = cand
                break

    out_flat = pl.pallas_call(
        encoder_kernel,
        out_shape=jax.ShapeDtypeStruct((N, H3 * W3 * C2), jnp.float32),
        grid_spec=pltpu.PrefetchScalarGridSpec(
            num_scalar_prefetch=0,
            grid=(N // NB,),
            in_specs=[
                pl.BlockSpec((NB, Hp, Wp), lambda n: (n, 0, 0)),
                pl.BlockSpec((K * Wp, 2 * W2 * C1), lambda n: (0, 0)),
                pl.BlockSpec((1, W2 * C1), lambda n: (0, 0)),
                pl.BlockSpec((K * W2 * C1, 2 * W3 * C2), lambda n: (0, 0)),
                pl.BlockSpec((1, W3 * C2), lambda n: (0, 0)),
            ],
            out_specs=pl.BlockSpec((NB, H3 * W3 * C2), lambda n: (n, 0)),
        ),
        compiler_params=pltpu.CompilerParams(
            dimension_semantics=("parallel",),
            vmem_limit_bytes=64 * 1024 * 1024,
        ),
    )(xp, t1, b1t, t2, b2t)

    # Lanes are ordered (i3, j3, c_out) -> NCHW.
    return out_flat.reshape(N, H3, W3, C2).transpose(0, 3, 1, 2)


def encoder_reference(x, w1, b1, w2, b2):
    """Pure-JAX reference matching the PyTorch forward (NCHW)."""
    dn1 = lax.conv_dimension_numbers(x.shape, w1.shape, ('NCHW', 'OIHW', 'NCHW'))
    y = lax.conv_general_dilated(x, w1, (1, 1), 'SAME', dimension_numbers=dn1,
                                 precision=lax.Precision.HIGHEST)
    y = jnp.maximum(y + b1[None, :, None, None], 0.0)
    y = lax.reduce_window(y, -jnp.inf, lax.max, (1, 1, 2, 2), (1, 1, 2, 2), 'VALID')
    dn2 = lax.conv_dimension_numbers(y.shape, w2.shape, ('NCHW', 'OIHW', 'NCHW'))
    y = lax.conv_general_dilated(y, w2, (1, 1), 'SAME', dimension_numbers=dn2,
                                 precision=lax.Precision.HIGHEST)
    y = jnp.maximum(y + b2[None, :, None, None], 0.0)
    y = lax.reduce_window(y, -jnp.inf, lax.max, (1, 1, 2, 2), (1, 1, 2, 2), 'VALID')
    return y


if __name__ == "__main__":
    key = jax.random.PRNGKey(0)
    k1, k2, k3, k4, k5 = jax.random.split(key, 5)

    N, H, W = 2, 16, 16
    x = jax.random.normal(k1, (N, 1, H, W), jnp.float32)
    w1 = jax.random.normal(k2, (16, 1, 5, 5), jnp.float32) * 0.1
    b1 = jax.random.normal(k3, (16,), jnp.float32) * 0.1
    w2 = jax.random.normal(k4, (8, 16, 5, 5), jnp.float32) * 0.05
    b2 = jax.random.normal(k5, (8,), jnp.float32) * 0.1

    out = jax.block_until_ready(encoder_forward(x, w1, b1, w2, b2))
    ref = jax.block_until_ready(encoder_reference(x, w1, b1, w2, b2))

    assert out.shape == (N, 8, H // 4, W // 4), out.shape
    max_err = float(np.max(np.abs(np.asarray(out) - np.asarray(ref))))
    assert np.allclose(np.asarray(out), np.asarray(ref), rtol=1e-2, atol=1e-2), max_err
    print("KERNEL_OK")
</pallas_src>

<mosaic_0001>
module attributes {stable_mosaic.version = 11 : i64} {
  func.func @encoder_kernel(%arg0: i32, %arg1: memref<2x20x20xf32, #tpu.memory_space<vmem>>, %arg2: memref<100x256xf32, #tpu.memory_space<vmem>>, %arg3: memref<1x128xf32, #tpu.memory_space<vmem>>, %arg4: memref<640x64xf32, #tpu.memory_space<vmem>>, %arg5: memref<1x32xf32, #tpu.memory_space<vmem>>, %arg6: memref<2x128xf32, #tpu.memory_space<vmem>>) attributes {dimension_semantics = [#tpu.dimension_semantics<parallel>], iteration_bounds = array<i64: 1>, scalar_prefetch = 0 : i64, scratch_operands = 0 : i64, tpu.core_type = #tpu.core_type<tc>, window_params = [{transform_indices = @transform_0, window_bounds = array<i64: 2, 20, 20>}, {pipeline_mode = #tpu.pipeline_mode<synchronous>, transform_indices = @transform_1, window_bounds = array<i64: 100, 256>}, {pipeline_mode = #tpu.pipeline_mode<synchronous>, transform_indices = @transform_2, window_bounds = array<i64: 1, 128>}, {pipeline_mode = #tpu.pipeline_mode<synchronous>, transform_indices = @transform_3, window_bounds = array<i64: 640, 64>}, {pipeline_mode = #tpu.pipeline_mode<synchronous>, transform_indices = @transform_4, window_bounds = array<i64: 1, 32>}, {transform_indices = @transform_5, window_bounds = array<i64: 2, 128>}]} {
    %c0 = arith.constant 0 : index
    %c0_0 = arith.constant 0 : index
    %c0_1 = arith.constant 0 : index
    %0 = vector.load %arg1[%c0, %c0_0, %c0_1] : memref<2x20x20xf32, #tpu.memory_space<vmem>>, vector<2x20x20xf32>
    %1 = vector.extract_strided_slice %0 {offsets = [0, 0, 0], sizes = [2, 16, 20], strides = [1, 1, 1]} : vector<2x20x20xf32> to vector<2x16x20xf32>
    %2 = vector.shape_cast %1 : vector<2x16x20xf32> to vector<32x20xf32>
    %3 = vector.extract_strided_slice %0 {offsets = [0, 1, 0], sizes = [2, 16, 20], strides = [1, 1, 1]} : vector<2x20x20xf32> to vector<2x16x20xf32>
    %4 = vector.shape_cast %3 : vector<2x16x20xf32> to vector<32x20xf32>
    %5 = vector.extract_strided_slice %0 {offsets = [0, 2, 0], sizes = [2, 16, 20], strides = [1, 1, 1]} : vector<2x20x20xf32> to vector<2x16x20xf32>
    %6 = vector.shape_cast %5 : vector<2x16x20xf32> to vector<32x20xf32>
    %7 = vector.extract_strided_slice %0 {offsets = [0, 3, 0], sizes = [2, 16, 20], strides = [1, 1, 1]} : vector<2x20x20xf32> to vector<2x16x20xf32>
    %8 = vector.shape_cast %7 : vector<2x16x20xf32> to vector<32x20xf32>
    %9 = vector.extract_strided_slice %0 {offsets = [0, 4, 0], sizes = [2, 16, 20], strides = [1, 1, 1]} : vector<2x20x20xf32> to vector<2x16x20xf32>
    %10 = vector.shape_cast %9 : vector<2x16x20xf32> to vector<32x20xf32>
    %11 = tpu.concatenate %2, %4, %6, %8, %10 in 1 : vector<32x20xf32>, vector<32x20xf32>, vector<32x20xf32>, vector<32x20xf32>, vector<32x20xf32> -> vector<32x100xf32>
    %c0_2 = arith.constant 0 : index
    %c0_3 = arith.constant 0 : index
    %12 = vector.load %arg2[%c0_2, %c0_3] : memref<100x256xf32, #tpu.memory_space<vmem>>, vector<100x256xf32>
    %cst = arith.constant dense<0.000000e+00> : vector<32x256xf32>
    %13 = tpu.matmul %11, %12, %cst {dimension_numbers = #tpu.dot_dimension_numbers<[1], [0], [0], [1], [0, 0, 1, 1], [], []>} : vector<32x100xf32>, vector<100x256xf32>, vector<32x256xf32> -> vector<32x256xf32>
    %14 = vector.shape_cast %13 : vector<32x256xf32> to vector<16x2x256xf32>
    %15 = vector.extract_strided_slice %14 {offsets = [0, 0, 0], sizes = [16, 1, 256], strides = [1, 1, 1]} : vector<16x2x256xf32> to vector<16x1x256xf32>
    %16 = vector.shape_cast %15 : vector<16x1x256xf32> to vector<16x256xf32>
    %17 = vector.extract_strided_slice %14 {offsets = [0, 1, 0], sizes = [16, 1, 256], strides = [1, 1, 1]} : vector<16x2x256xf32> to vector<16x1x256xf32>
    %18 = vector.shape_cast %17 : vector<16x1x256xf32> to vector<16x256xf32>
    %19 = arith.maximumf %16, %18 : vector<16x256xf32>
    %20 = vector.extract_strided_slice %19 {offsets = [0, 0], sizes = [16, 128], strides = [1, 1]} : vector<16x256xf32> to vector<16x128xf32>
    %21 = vector.extract_strided_slice %19 {offsets = [0, 128], sizes = [16, 128], strides = [1, 1]} : vector<16x256xf32> to vector<16x128xf32>
    %22 = arith.maximumf %20, %21 : vector<16x128xf32>
    %c0_4 = arith.constant 0 : index
    %c0_5 = arith.constant 0 : index
    %23 = vector.load %arg3[%c0_4, %c0_5] : memref<1x128xf32, #tpu.memory_space<vmem>>, vector<1x128xf32>
    %24 = vector.broadcast %23 : vector<1x128xf32> to vector<16x128xf32>
    %25 = arith.addf %22, %24 : vector<16x128xf32>
    %cst_6 = arith.constant 0.000000e+00 : f32
    %26 = vector.broadcast %cst_6 : f32 to vector<16x128xf32>
    %27 = arith.maximumf %25, %26 : vector<16x128xf32>
    %28 = vector.shape_cast %27 : vector<16x128xf32> to vector<2x8x128xf32>
    %cst_7 = arith.constant 0.000000e+00 : f32
    %29 = vector.broadcast %cst_7 : f32 to vector<2x2x128xf32>
    %30 = tpu.concatenate %29, %28, %29 in 1 : vector<2x2x128xf32>, vector<2x8x128xf32>, vector<2x2x128xf32> -> vector<2x12x128xf32>
    %31 = vector.extract_strided_slice %30 {offsets = [0, 0, 0], sizes = [2, 8, 128], strides = [1, 1, 1]} : vector<2x12x128xf32> to vector<2x8x128xf32>
    %32 = vector.shape_cast %31 : vector<2x8x128xf32> to vector<16x128xf32>
    %33 = vector.extract_strided_slice %30 {offsets = [0, 1, 0], sizes = [2, 8, 128], strides = [1, 1, 1]} : vector<2x12x128xf32> to vector<2x8x128xf32>
    %34 = vector.shape_cast %33 : vector<2x8x128xf32> to vector<16x128xf32>
    %35 = vector.extract_strided_slice %30 {offsets = [0, 2, 0], sizes = [2, 8, 128], strides = [1, 1, 1]} : vector<2x12x128xf32> to vector<2x8x128xf32>
    %36 = vector.shape_cast %35 : vector<2x8x128xf32> to vector<16x128xf32>
    %37 = vector.extract_strided_slice %30 {offsets = [0, 3, 0], sizes = [2, 8, 128], strides = [1, 1, 1]} : vector<2x12x128xf32> to vector<2x8x128xf32>
    %38 = vector.shape_cast %37 : vector<2x8x128xf32> to vector<16x128xf32>
    %39 = vector.extract_strided_slice %30 {offsets = [0, 4, 0], sizes = [2, 8, 128], strides = [1, 1, 1]} : vector<2x12x128xf32> to vector<2x8x128xf32>
    %40 = vector.shape_cast %39 : vector<2x8x128xf32> to vector<16x128xf32>
    %41 = tpu.concatenate %32, %34, %36, %38, %40 in 1 : vector<16x128xf32>, vector<16x128xf32>, vector<16x128xf32>, vector<16x128xf32>, vector<16x128xf32> -> vector<16x640xf32>
    %c0_8 = arith.constant 0 : index
    %c0_9 = arith.constant 0 : index
    %42 = vector.load %arg4[%c0_8, %c0_9] : memref<640x64xf32, #tpu.memory_space<vmem>>, vector<640x64xf32>
    %cst_10 = arith.constant dense<0.000000e+00> : vector<16x64xf32>
    %43 = tpu.matmul %41, %42, %cst_10 {dimension_numbers = #tpu.dot_dimension_numbers<[1], [0], [0], [1], [0, 0, 1, 1], [], []>} : vector<16x640xf32>, vector<640x64xf32>, vector<16x64xf32> -> vector<16x64xf32>
    %44 = vector.shape_cast %43 : vector<16x64xf32> to vector<8x2x64xf32>
    %45 = vector.extract_strided_slice %44 {offsets = [0, 0, 0], sizes = [8, 1, 64], strides = [1, 1, 1]} : vector<8x2x64xf32> to vector<8x1x64xf32>
    %46 = vector.shape_cast %45 : vector<8x1x64xf32> to vector<8x64xf32>
    %47 = vector.extract_strided_slice %44 {offsets = [0, 1, 0], sizes = [8, 1, 64], strides = [1, 1, 1]} : vector<8x2x64xf32> to vector<8x1x64xf32>
    %48 = vector.shape_cast %47 : vector<8x1x64xf32> to vector<8x64xf32>
    %49 = arith.maximumf %46, %48 : vector<8x64xf32>
    %50 = vector.extract_strided_slice %49 {offsets = [0, 0], sizes = [8, 32], strides = [1, 1]} : vector<8x64xf32> to vector<8x32xf32>
    %51 = vector.extract_strided_slice %49 {offsets = [0, 32], sizes = [8, 32], strides = [1, 1]} : vector<8x64xf32> to vector<8x32xf32>
    %52 = arith.maximumf %50, %51 : vector<8x32xf32>
    %c0_11 = arith.constant 0 : index
    %c0_12 = arith.constant 0 : index
    %53 = vector.load %arg5[%c0_11, %c0_12] : memref<1x32xf32, #tpu.memory_space<vmem>>, vector<1x32xf32>
    %54 = vector.broadcast %53 : vector<1x32xf32> to vector<8x32xf32>
    %55 = arith.addf %52, %54 : vector<8x32xf32>
    %cst_13 = arith.constant 0.000000e+00 : f32
    %56 = vector.broadcast %cst_13 : f32 to vector<8x32xf32>
    %57 = arith.maximumf %55, %56 : vector<8x32xf32>
    %58 = vector.shape_cast %57 : vector<8x32xf32> to vector<2x4x32xf32>
    %59 = vector.extract_strided_slice %58 {offsets = [0, 0, 0], sizes = [2, 1, 32], strides = [1, 1, 1]} : vector<2x4x32xf32> to vector<2x1x32xf32>
    %60 = vector.shape_cast %59 : vector<2x1x32xf32> to vector<2x32xf32>
    %61 = vector.extract_strided_slice %58 {offsets = [0, 1, 0], sizes = [2, 1, 32], strides = [1, 1, 1]} : vector<2x4x32xf32> to vector<2x1x32xf32>
    %62 = vector.shape_cast %61 : vector<2x1x32xf32> to vector<2x32xf32>
    %63 = vector.extract_strided_slice %58 {offsets = [0, 2, 0], sizes = [2, 1, 32], strides = [1, 1, 1]} : vector<2x4x32xf32> to vector<2x1x32xf32>
    %64 = vector.shape_cast %63 : vector<2x1x32xf32> to vector<2x32xf32>
    %65 = vector.extract_strided_slice %58 {offsets = [0, 3, 0], sizes = [2, 1, 32], strides = [1, 1, 1]} : vector<2x4x32xf32> to vector<2x1x32xf32>
    %66 = vector.shape_cast %65 : vector<2x1x32xf32> to vector<2x32xf32>
    %67 = tpu.concatenate %60, %62, %64, %66 in 1 : vector<2x32xf32>, vector<2x32xf32>, vector<2x32xf32>, vector<2x32xf32> -> vector<2x128xf32>
    %c0_14 = arith.constant 0 : index
    %c0_15 = arith.constant 0 : index
    %68 = vector.load %arg6[%c0_14, %c0_15] : memref<2x128xf32, #tpu.memory_space<vmem>>, vector<2x128xf32>
    tpu.vector_store %arg6[%c0_14, %c0_15], %67 {strides = array<i32>} : memref<2x128xf32, #tpu.memory_space<vmem>>, vector<2x128xf32>,
    return
  }
  func.func @transform_0(%arg0: i32) -> (i32, i32, i32) {
    %c0_i32 = arith.constant 0 : i32
    %c0_i32_0 = arith.constant 0 : i32
    %c0_i32_1 = arith.constant 0 : i32
    return %arg0, %c0_i32, %c0_i32_0 : i32, i32, i32
  }
  func.func @transform_1(%arg0: i32) -> (i32, i32) {
    %c0_i32 = arith.constant 0 : i32
    %c0_i32_0 = arith.constant 0 : i32
    %c0_i32_1 = arith.constant 0 : i32
    return %c0_i32, %c0_i32_0 : i32, i32
  }
  func.func @transform_2(%arg0: i32) -> (i32, i32) {
    %c0_i32 = arith.constant 0 : i32
    %c0_i32_0 = arith.constant 0 : i32
    %c0_i32_1 = arith.constant 0 : i32
    return %c0_i32, %c0_i32_0 : i32, i32
  }
  func.func @transform_3(%arg0: i32) -> (i32, i32) {
    %c0_i32 = arith.constant 0 : i32
    %c0_i32_0 = arith.constant 0 : i32
    %c0_i32_1 = arith.constant 0 : i32
    return %c0_i32, %c0_i32_0 : i32, i32
  }
  func.func @transform_4(%arg0: i32) -> (i32, i32) {
    %c0_i32 = arith.constant 0 : i32
    %c0_i32_0 = arith.constant 0 : i32
    %c0_i32_1 = arith.constant 0 : i32
    return %c0_i32, %c0_i32_0 : i32, i32
  }
  func.func @transform_5(%arg0: i32) -> (i32, i32) {
    %c0_i32 = arith.constant 0 : i32
    %c0_i32_0 = arith.constant 0 : i32
    return %arg0, %c0_i32 : i32, i32
  }
}

</mosaic_0001>

<llo_original>
// kernel: tpu_custom_call.1
$region0: #{tpu_custom_call.1}
  #allocation0 [shape = 'u32[]', space=smem, size = 0x4, offset = 0x4, fixed_abs, tag = 'smem constant byte address 0x4 - core index']
  #allocation1 [shape = 'u32[72,128]{1,0:T(1,128)}', space=vmem, size = 0x9000, scoped, tag = 'internal scratch']
  %s0 = inlined_call_operand.vmem [shape: f32[2,20,20], index: 0, kind: input, shape index: {}]
  %s1 = inlined_call_operand.vmem [shape: f32[100,256], index: 1, kind: input, shape index: {}]
  %s2 = inlined_call_operand.vmem [shape: f32[1,128], index: 2, kind: input, shape index: {}]
  %s3 = inlined_call_operand.vmem [shape: f32[640,64], index: 3, kind: input, shape index: {}]
  %s4 = inlined_call_operand.vmem [shape: f32[1,32], index: 4, kind: input, shape index: {}]
  %s5 = inlined_call_operand.hbm [shape: f32[2,128], index: 5, kind: output, shape index: {}]
  %s6 = sld [smem:[#allocation0]]
  $region30: #{tpu_custom_call.1} parent=0
    _
  %s8 = ssub.s32 1, %s6
  %s9 = scalar_select 0, %s8, %s6
  $region1: #{tpu_custom_call.1} parent=0
    #allocation2 [shape = 'u8[1024]{0}', space=vmem, size = 0x400, scoped, tag = 'output window, operand 0, single buffered']
    #allocation3 [shape = 's32[1]{0}', space=sflag, size = 0x4, scoped, tag = 'scoped memory for tpu_custom_call.1']
    %10 = vsyncpa [#allocation3], 0
    // Predicated region
    $region2: #{tpu_custom_call.1} parent=1 // pred_check
      _
    $region3: #{tpu_custom_call.1} parent=1 // pred_check_branch
      %12 = sbr.rel (0) target = $region5
    $region4: #{tpu_custom_call.1} parent=1 // pred_region
      _
    $region5: #{tpu_custom_call.1} parent=1 // pred_fallthru
      _
    // Predicated region
    $region6: #{tpu_custom_call.1} parent=1 // pred_check
      _
    $region7: #{tpu_custom_call.1} parent=1 // pred_check_branch
      %14 = sbr.rel (0) target = $region9
    $region8: #{tpu_custom_call.1} parent=1 // pred_region
      _
    $region9: #{tpu_custom_call.1} parent=1 // pred_fallthru
      _
    // Predicated region
    $region10: #{tpu_custom_call.1} parent=1 // pred_check
      _
    $region11: #{tpu_custom_call.1} parent=1 // pred_check_branch
      %16 = sbr.rel (0) target = $region13
    $region12: #{tpu_custom_call.1} parent=1 // pred_region
      _
    $region13: #{tpu_custom_call.1} parent=1 // pred_fallthru
      _
    // Predicated region
    $region14: #{tpu_custom_call.1} parent=1 // pred_check
      _
    $region15: #{tpu_custom_call.1} parent=1 // pred_check_branch
      %18 = sbr.rel (0) target = $region17
    $region16: #{tpu_custom_call.1} parent=1 // pred_region
      _
    $region17: #{tpu_custom_call.1} parent=1 // pred_fallthru
      _
    // Predicated region
    $region18: #{tpu_custom_call.1} parent=1 // pred_check
      _
    $region19: #{tpu_custom_call.1} parent=1 // pred_check_branch
      %20 = sbr.rel (0) target = $region21
    $region20: #{tpu_custom_call.1} parent=1 // pred_region
      _
    $region21: #{tpu_custom_call.1} parent=1 // pred_fallthru
      _
    %v21 = vld [vmem:[%s0] sm:$0xff]
    %v22 = vld [vmem:[%s0 + $0x8] sm:$0xff]
    %v23 = vld [vmem:[%s0 + $0x10] sm:$0xf]
    %v24 = vld [vmem:[%s0 + $0x18] sm:$0xff]
    %v25 = vld [vmem:[%s0 + $0x20] sm:$0xff]
    %v26 = vld [vmem:[%s0 + $0x28] sm:$0xf]
    %vm33 = vcmask 1046528
    %v34 = vrot.slane %v21, 1
    %v35 = vrot.slane %v22, 1
    %v36 = vsel %vm33, %v34, %v35
    %v37 = vrot.slane %v23, 1
    %v38 = vsel %vm33, %v35, %v37
    %v39 = vrot.slane %v24, 1
    %v40 = vrot.slane %v25, 1
    %v41 = vsel %vm33, %v39, %v40
    %v42 = vrot.slane %v26, 1
    %v43 = vsel %vm33, %v40, %v42
    %vm44 = vcmask 1045504
    %v45 = vrot.slane %v21, 2
    %v46 = vrot.slane %v22, 2
    %v47 = vsel %vm44, %v45, %v46
    %v48 = vrot.slane %v23, 2
    %v49 = vsel %vm44, %v46, %v48
    %v50 = vrot.slane %v24, 2
    %v51 = vrot.slane %v25, 2
    %v52 = vsel %vm44, %v50, %v51
    %v53 = vrot.slane %v26, 2
    %v54 = vsel %vm44, %v51, %v53
    %vm55 = vcmask 1044480
    %v56 = vrot.slane %v21, 3
    %v57 = vrot.slane %v22, 3
    %v58 = vsel %vm55, %v56, %v57
    %v59 = vrot.slane %v23, 3
    %v60 = vsel %vm55, %v57, %v59
    %v61 = vrot.slane %v24, 3
    %v62 = vrot.slane %v25, 3
    %v63 = vsel %vm55, %v61, %v62
    %v64 = vrot.slane %v26, 3
    %v65 = vsel %vm55, %v62, %v64
    %vm66 = vcmask 1043456
    %v67 = vrot.slane %v21, 4
    %v68 = vrot.slane %v22, 4
    %v69 = vsel %vm66, %v67, %v68
    %v70 = vrot.slane %v23, 4
    %v71 = vsel %vm66, %v68, %v70
    %v72 = vrot.slane %v24, 4
    %v73 = vrot.slane %v25, 4
    %v74 = vsel %vm66, %v72, %v73
    %v75 = vrot.slane %v26, 4
    %v76 = vsel %vm66, %v73, %v75
    %77 = vrot.lane.b32.xlu0 %v36, 20
    %v78 = vpop.permute.xlu0 %77
    %79 = vrot.lane.b32.xlu0 %v38, 20
    %v80 = vpop.permute.xlu0 %79
    %81 = vrot.lane.b32.xlu0 %v41, 20
    %v82 = vpop.permute.xlu0 %81
    %83 = vrot.lane.b32.xlu0 %v43, 20
    %v84 = vpop.permute.xlu0 %83
    %89 = vrot.lane.b32.xlu0 %v47, 40
    %v90 = vpop.permute.xlu0 %89
    %91 = vrot.lane.b32.xlu0 %v49, 40
    %v92 = vpop.permute.xlu0 %91
    %93 = vrot.lane.b32.xlu0 %v52, 40
    %v94 = vpop.permute.xlu0 %93
    %95 = vrot.lane.b32.xlu0 %v54, 40
    %v96 = vpop.permute.xlu0 %95
    %101 = vrot.lane.b32.xlu0 %v58, 60
    %v102 = vpop.permute.xlu0 %101
    %103 = vrot.lane.b32.xlu0 %v60, 60
    %v104 = vpop.permute.xlu0 %103
    %105 = vrot.lane.b32.xlu0 %v63, 60
    %v106 = vpop.permute.xlu0 %105
    %107 = vrot.lane.b32.xlu0 %v65, 60
    %v108 = vpop.permute.xlu0 %107
    %113 = vrot.lane.b32.xlu0 %v69, 80
    %v114 = vpop.permute.xlu0 %113
    %115 = vrot.lane.b32.xlu0 %v71, 80
    %v116 = vpop.permute.xlu0 %115
    %117 = vrot.lane.b32.xlu0 %v74, 80
    %v118 = vpop.permute.xlu0 %117
    %119 = vrot.lane.b32.xlu0 %v76, 80
    %v120 = vpop.permute.xlu0 %119
    %vm125 = vcmask 162816
    %v126 = vsel %vm125, %v21, %v78
    %v127 = vsel %vm125, %v22, %v80
    %v128 = vsel %vm125, %v24, %v82
    %v129 = vsel %vm125, %v25, %v84
    %vm130 = vcmask 326656
    %v131 = vsel %vm130, %v126, %v90
    %v132 = vsel %vm130, %v127, %v92
    %v133 = vsel %vm130, %v128, %v94
    %v134 = vsel %vm130, %v129, %v96
    %vm135 = vcmask 490496
    %v136 = vsel %vm135, %v131, %v102
    %v137 = vsel %vm135, %v132, %v104
    %v138 = vsel %vm135, %v133, %v106
    %v139 = vsel %vm135, %v134, %v108
    %vm140 = vcmask 654336
    %v141 = vsel %vm140, %v136, %v114
    %v142 = vsel %vm140, %v137, %v116
    %v143 = vsel %vm140, %v138, %v118
    %v144 = vsel %vm140, %v139, %v120
    %v145 = vld [vmem:[%s1] sm:$0xff]
    %v146 = vld [vmem:[%s1 + $0x8] sm:$0xff]
    %v147 = vld [vmem:[%s1 + $0x10] sm:$0xff]
    %v148 = vld [vmem:[%s1 + $0x18] sm:$0xff]
    %v149 = vld [vmem:[%s1 + $0x20] sm:$0xff]
    %v150 = vld [vmem:[%s1 + $0x28] sm:$0xff]
    %v151 = vld [vmem:[%s1 + $0x30] sm:$0xff]
    %v152 = vld [vmem:[%s1 + $0x38] sm:$0xff]
    %v153 = vld [vmem:[%s1 + $0x40] sm:$0xff]
    %v154 = vld [vmem:[%s1 + $0x48] sm:$0xff]
    %v155 = vld [vmem:[%s1 + $0x50] sm:$0xff]
    %v156 = vld [vmem:[%s1 + $0x58] sm:$0xff]
    %v157 = vld [vmem:[%s1 + $0x60] sm:$0xff]
    %v158 = vld [vmem:[%s1 + $0x68] sm:$0xff]
    %v159 = vld [vmem:[%s1 + $0x70] sm:$0xff]
    %v160 = vld [vmem:[%s1 + $0x78] sm:$0xff]
    %v161 = vld [vmem:[%s1 + $0x80] sm:$0xff]
    %v162 = vld [vmem:[%s1 + $0x88] sm:$0xff]
    %v163 = vld [vmem:[%s1 + $0x90] sm:$0xff]
    %v164 = vld [vmem:[%s1 + $0x98] sm:$0xff]
    %v165 = vld [vmem:[%s1 + $0xa0] sm:$0xff]
    %v166 = vld [vmem:[%s1 + $0xa8] sm:$0xff]
    %v167 = vld [vmem:[%s1 + $0xb0] sm:$0xff]
    %v168 = vld [vmem:[%s1 + $0xb8] sm:$0xff]
    %v169 = vld [vmem:[%s1 + $0xc0] sm:$0xf]
    %v170 = vld [vmem:[%s1 + $0xc8] sm:$0xf]
    %vm171 = vcmask 818176
    %v173 = vsel %vm171, %v141, 0
    %v176 = vsel %vm171, %v142, 0
    %v179 = vsel %vm171, %v143, 0
    %v182 = vsel %vm171, %v144, 0
    %v185 = vsel %vm66, %v169, 0
    %v188 = vsel %vm66, %v170, 0
    %190 = vmatpush.msra.mxu0 0.0
    %191 = vmatpush.msra.mxu0 0.0
    %192 = vmatpush.msra.mxu0 0.0
    %193 = vmatpush.msra.mxu0 %v185
    %194 = vmatpush.msra.mxu0 %v167
    %195 = vmatpush.msra.mxu0 %v165
    %196 = vmatpush.msra.mxu0 %v163
    %197 = vmatpush.msra.mxu0 %v161
    %198 = vmatpush.msra.mxu0 %v159
    %199 = vmatpush.msra.mxu0 %v157
    %200 = vmatpush.msra.mxu0 %v155
    %201 = vmatpush.msra.mxu0 %v153
    %202 = vmatpush.msra.mxu0 %v151
    %203 = vmatpush.msra.mxu0 %v149
    %204 = vmatpush.msra.mxu0 %v147
    %205 = vmatpush.msra.mxu0 %v145
    %206 = vmatmul.f32.gmra.mxu0 %v173
    %v207 = vpop.f32.mrf.mxu0
    %v208 = vadd.f32 0.0, %v207
    %209 = vmatmul.f32.gmra.mxu0 %v176
    %v210 = vpop.f32.mrf.mxu0
    %v211 = vadd.f32 0.0, %v210
    %212 = vmatmul.f32.gmra.mxu0 %v179
    %v213 = vpop.f32.mrf.mxu0
    %v214 = vadd.f32 0.0, %v213
    %215 = vmatmul.f32.gmra.mxu0 %v182
    %v216 = vpop.f32.mrf.mxu0
    %v217 = vadd.f32 0.0, %v216
    %218 = vdwg.mxu0
    %219 = vmatpush.msra.mxu0 0.0
    %220 = vmatpush.msra.mxu0 0.0
    %221 = vmatpush.msra.mxu0 0.0
    %222 = vmatpush.msra.mxu0 %v188
    %223 = vmatpush.msra.mxu0 %v168
    %224 = vmatpush.msra.mxu0 %v166
    %225 = vmatpush.msra.mxu0 %v164
    %226 = vmatpush.msra.mxu0 %v162
    %227 = vmatpush.msra.mxu0 %v160
    %228 = vmatpush.msra.mxu0 %v158
    %229 = vmatpush.msra.mxu0 %v156
    %230 = vmatpush.msra.mxu0 %v154
    %231 = vmatpush.msra.mxu0 %v152
    %232 = vmatpush.msra.mxu0 %v150
    %233 = vmatpush.msra.mxu0 %v148
    %234 = vmatpush.msra.mxu0 %v146
    %235 = vmatmul.f32.gmra.mxu0 %v173
    %v236 = vpop.f32.mrf.mxu0
    %v237 = vadd.f32 0.0, %v236
    %238 = vmatmul.f32.gmra.mxu0 %v176
    %v239 = vpop.f32.mrf.mxu0
    %v240 = vadd.f32 0.0, %v239
    %241 = vmatmul.f32.gmra.mxu0 %v179
    %v242 = vpop.f32.mrf.mxu0
    %v243 = vadd.f32 0.0, %v242
    %244 = vmatmul.f32.gmra.mxu0 %v182
    %v245 = vpop.f32.mrf.mxu0
    %v246 = vadd.f32 0.0, %v245
    %247 = vdwg.mxu0
    %v256 = vrot.slane %v237, 6
    %v257 = vrot.slane %v240, 6
    %v258 = vrot.slane %v243, 6
    %v259 = vrot.slane %v246, 6
    %vm260 = vcmask 1041408
    %v261 = vsel %vm260, %v208, %v256
    %vm262 = vcmask 1043458
    %v263 = vsel %vm262, %v208, %v256
    %v264 = vrot.slane %v263, 2
    %vm265 = vcmask 1045508
    %v266 = vsel %vm265, %v208, %v256
    %v267 = vrot.slane %v266, 4
    %v268 = vsel %vm44, %v256, %v208
    %v269 = vrot.slane %v268, 6
    %v270 = vsel %vm260, %v211, %v257
    %v271 = vsel %vm262, %v211, %v257
    %v272 = vrot.slane %v271, 2
    %v273 = vsel %vm265, %v211, %v257
    %v274 = vrot.slane %v273, 4
    %v275 = vsel %vm44, %v257, %v211
    %v276 = vrot.slane %v275, 6
    %v277 = vsel %vm260, %v214, %v258
    %v278 = vsel %vm262, %v214, %v258
    %v279 = vrot.slane %v278, 2
    %v280 = vsel %vm265, %v214, %v258
    %v281 = vrot.slane %v280, 4
    %v282 = vsel %vm44, %v258, %v214
    %v283 = vrot.slane %v282, 6
    %v284 = vsel %vm260, %v217, %v259
    %v285 = vsel %vm262, %v217, %v259
    %v286 = vrot.slane %v285, 2
    %v287 = vsel %vm265, %v217, %v259
    %v288 = vrot.slane %v287, 4
    %v289 = vsel %vm44, %v259, %v217
    %v290 = vrot.slane %v289, 6
    %v307 = vrot.slane %v261, 7
    %v308 = vrot.slane %v307, 2
    %v309 = vrot.slane %v264, 7
    %v310 = vrot.slane %v309, 2
    %v311 = vrot.slane %v267, 7
    %v312 = vrot.slane %v311, 2
    %v313 = vrot.slane %v269, 7
    %v314 = vrot.slane %v313, 2
    %v315 = vrot.slane %v270, 7
    %v316 = vrot.slane %v315, 2
    %v317 = vrot.slane %v272, 7
    %v318 = vrot.slane %v317, 2
    %v319 = vrot.slane %v274, 7
    %v320 = vrot.slane %v319, 2
    %v321 = vrot.slane %v276, 7
    %v322 = vrot.slane %v321, 2
    %v323 = vrot.slane %v277, 7
    %v324 = vrot.slane %v323, 2
    %v325 = vrot.slane %v279, 7
    %v326 = vrot.slane %v325, 2
    %v327 = vrot.slane %v281, 7
    %v328 = vrot.slane %v327, 2
    %v329 = vrot.slane %v283, 7
    %v330 = vrot.slane %v329, 2
    %v331 = vrot.slane %v284, 7
    %v332 = vrot.slane %v331, 2
    %v333 = vrot.slane %v286, 7
    %v334 = vrot.slane %v333, 2
    %v335 = vrot.slane %v288, 7
    %v336 = vrot.slane %v335, 2
    %v337 = vrot.slane %v290, 7
    %v338 = vrot.slane %v337, 2
    %v355 = vmax.f32 %v261, %v308
    %v356 = vmax.f32 %v264, %v310
    %v357 = vmax.f32 %v267, %v312
    %v358 = vmax.f32 %v269, %v314
    %v359 = vmax.f32 %v270, %v316
    %v360 = vmax.f32 %v272, %v318
    %v361 = vmax.f32 %v274, %v320
    %v362 = vmax.f32 %v276, %v322
    %v363 = vmax.f32 %v277, %v324
    %v364 = vmax.f32 %v279, %v326
    %v365 = vmax.f32 %v281, %v328
    %v366 = vmax.f32 %v283, %v330
    %v367 = vmax.f32 %v284, %v332
    %v368 = vmax.f32 %v286, %v334
    %v369 = vmax.f32 %v288, %v336
    %v370 = vmax.f32 %v290, %v338
    %v387 = vrot.slane %v355, 2
    %v388 = vrot.slane %v356, 2
    %v389 = vrot.slane %v357, 2
    %v390 = vrot.slane %v358, 2
    %v391 = vrot.slane %v359, 2
    %v392 = vrot.slane %v360, 2
    %v393 = vrot.slane %v361, 2
    %v394 = vrot.slane %v362, 2
    %v395 = vrot.slane %v363, 2
    %v396 = vrot.slane %v364, 2
    %v397 = vrot.slane %v365, 2
    %v398 = vrot.slane %v366, 2
    %v399 = vrot.slane %v367, 2
    %v400 = vrot.slane %v368, 2
    %v401 = vrot.slane %v369, 2
    %v402 = vrot.slane %v370, 2
    %v419 = vmax.f32 %v355, %v387
    %v420 = vmax.f32 %v356, %v388
    %v421 = vmax.f32 %v357, %v389
    %v422 = vmax.f32 %v358, %v390
    %v423 = vmax.f32 %v359, %v391
    %v424 = vmax.f32 %v360, %v392
    %v425 = vmax.f32 %v361, %v393
    %v426 = vmax.f32 %v362, %v394
    %v427 = vmax.f32 %v363, %v395
    %v428 = vmax.f32 %v364, %v396
    %v429 = vmax.f32 %v365, %v397
    %v430 = vmax.f32 %v366, %v398
    %v431 = vmax.f32 %v367, %v399
    %v432 = vmax.f32 %v368, %v400
    %v433 = vmax.f32 %v369, %v401
    %v434 = vmax.f32 %v370, %v402
    %v435 = vld [vmem:[%s2] sm:$0x1]
    %v437 = vperm.slane %v435, 0
    %v438 = vrot.slane %v437, 2
    %v439 = vrot.slane %v437, 4
    %v440 = vrot.slane %v437, 6
    %v441 = vrot.slane %v437, 1
    %v442 = vrot.slane %v438, 1
    %v443 = vrot.slane %v439, 1
    %v444 = vrot.slane %v440, 1
    %v453 = vadd.f32 %v419, %v437
    %v454 = vadd.f32 %v420, %v441
    %v455 = vadd.f32 %v421, %v438
    %v456 = vadd.f32 %v422, %v442
    %v457 = vadd.f32 %v423, %v439
    %v458 = vadd.f32 %v424, %v443
    %v459 = vadd.f32 %v425, %v440
    %v460 = vadd.f32 %v426, %v444
    %v461 = vadd.f32 %v427, %v437
    %v462 = vadd.f32 %v428, %v441
    %v463 = vadd.f32 %v429, %v438
    %v464 = vadd.f32 %v430, %v442
    %v465 = vadd.f32 %v431, %v439
    %v466 = vadd.f32 %v432, %v443
    %v467 = vadd.f32 %v433, %v440
    %v468 = vadd.f32 %v434, %v444
    %v469 = vmax.f32 %v453, 0.0
    %v470 = vmax.f32 %v454, 0.0
    %v471 = vmax.f32 %v455, 0.0
    %v472 = vmax.f32 %v456, 0.0
    %v473 = vmax.f32 %v457, 0.0
    %v474 = vmax.f32 %v458, 0.0
    %v475 = vmax.f32 %v459, 0.0
    %v476 = vmax.f32 %v460, 0.0
    %v477 = vmax.f32 %v461, 0.0
    %v478 = vmax.f32 %v462, 0.0
    %v479 = vmax.f32 %v463, 0.0
    %v480 = vmax.f32 %v464, 0.0
    %v481 = vmax.f32 %v465, 0.0
    %v482 = vmax.f32 %v466, 0.0
    %v483 = vmax.f32 %v467, 0.0
    %v484 = vmax.f32 %v468, 0.0
    %v501 = vperm.slane %v469, 0
    %v502 = vperm.slane %v470, 0
    %v503 = vperm.slane %v471, 0
    %v504 = vperm.slane %v472, 0
    %v505 = vperm.slane %v473, 0
    %v506 = vperm.slane %v474, 0
    %v507 = vperm.slane %v475, 0
    %v508 = vperm.slane %v476, 0
    %v509 = vperm.slane %v477, 0
    %v510 = vperm.slane %v478, 0
    %v511 = vperm.slane %v479, 0
    %v512 = vperm.slane %v480, 0
    %v513 = vperm.slane %v481, 0
    %v514 = vperm.slane %v482, 0
    %v515 = vperm.slane %v483, 0
    %v516 = vperm.slane %v484, 0
    %vm517 = vcmask 1043459
    %v518 = vsel %vm517, %v502, %v501
    %vm519 = vcmask 1044484
    %v520 = vsel %vm519, %v503, %v518
    %vm521 = vcmask 1045509
    %v522 = vsel %vm521, %v504, %v520
    %vm523 = vcmask 1046534
    %v524 = vsel %vm523, %v505, %v522
    %vm525 = vcmask 1047559
    %v526 = vsel %vm525, %v506, %v524
    %vm527 = vcmask 1041409
    %v528 = vsel %vm527, %v508, %v507
    %v529 = vsel %vm517, %v510, %v509
    %v530 = vsel %vm519, %v511, %v529
    %v531 = vsel %vm521, %v512, %v530
    %v532 = vsel %vm523, %v513, %v531
    %v533 = vsel %vm525, %v514, %v532
    %v534 = vsel %vm527, %v516, %v515
    %v539 = vsel %vm260, 0.0, %v526
    %v540 = vsel %vm260, 0.0, %v533
    %v541 = vsel %vm260, %v528, 0.0
    %v542 = vsel %vm260, %v534, 0.0
    %v547 = vrot.slane %v539, 1
    %v548 = vrot.slane %v541, 1
    %v549 = vsel %vm33, %v547, %v548
    %v550 = vrot.slane %v540, 1
    %v551 = vrot.slane %v542, 1
    %v552 = vsel %vm33, %v550, %v551
    %v555 = vrot.slane %v539, 2
    %v556 = vrot.slane %v541, 2
    %v557 = vsel %vm44, %v555, %v556
    %v558 = vrot.slane %v540, 2
    %v559 = vrot.slane %v542, 2
    %v560 = vsel %vm44, %v558, %v559
    %v563 = vrot.slane %v539, 3
    %v564 = vrot.slane %v541, 3
    %v565 = vsel %vm55, %v563, %v564
    %v566 = vrot.slane %v540, 3
    %v567 = vrot.slane %v542, 3
    %v568 = vsel %vm55, %v566, %v567
    %v571 = vrot.slane %v539, 4
    %v572 = vrot.slane %v541, 4
    %v573 = vsel %vm66, %v571, %v572
    %v574 = vrot.slane %v540, 4
    %v575 = vrot.slane %v542, 4
    %v576 = vsel %vm66, %v574, %v575
    %v579 = vld [vmem:[%s3] sm:$0xff]
    %v580 = vld [vmem:[%s3 + $0x8] sm:$0xff]
    %v581 = vld [vmem:[%s3 + $0x10] sm:$0xff]
    %v582 = vld [vmem:[%s3 + $0x18] sm:$0xff]
    %v583 = vld [vmem:[%s3 + $0x20] sm:$0xff]
    %v584 = vld [vmem:[%s3 + $0x28] sm:$0xff]
    %v585 = vld [vmem:[%s3 + $0x30] sm:$0xff]
    %v586 = vld [vmem:[%s3 + $0x38] sm:$0xff]
    %v587 = vld [vmem:[%s3 + $0x40] sm:$0xff]
    %v588 = vld [vmem:[%s3 + $0x48] sm:$0xff]
    %v589 = vld [vmem:[%s3 + $0x50] sm:$0xff]
    %v590 = vld [vmem:[%s3 + $0x58] sm:$0xff]
    %v591 = vld [vmem:[%s3 + $0x60] sm:$0xff]
    %v592 = vld [vmem:[%s3 + $0x68] sm:$0xff]
    %v593 = vld [vmem:[%s3 + $0x70] sm:$0xff]
    %v594 = vld [vmem:[%s3 + $0x78] sm:$0xff]
    %v595 = vld [vmem:[%s3 + $0x80] sm:$0xff]
    %v596 = vld [vmem:[%s3 + $0x88] sm:$0xff]
    %v597 = vld [vmem:[%s3 + $0x90] sm:$0xff]
    %v598 = vld [vmem:[%s3 + $0x98] sm:$0xff]
    %v599 = vld [vmem:[%s3 + $0xa0] sm:$0xff]
    %v600 = vld [vmem:[%s3 + $0xa8] sm:$0xff]
    %v601 = vld [vmem:[%s3 + $0xb0] sm:$0xff]
    %v602 = vld [vmem:[%s3 + $0xb8] sm:$0xff]
    %v603 = vld [vmem:[%s3 + $0xc0] sm:$0xff]
    %v604 = vld [vmem:[%s3 + $0xc8] sm:$0xff]
    %v605 = vld [vmem:[%s3 + $0xd0] sm:$0xff]
    %v606 = vld [vmem:[%s3 + $0xd8] sm:$0xff]
    %v607 = vld [vmem:[%s3 + $0xe0] sm:$0xff]
    %v608 = vld [vmem:[%s3 + $0xe8] sm:$0xff]
    %v609 = vld [vmem:[%s3 + $0xf0] sm:$0xff]
    %v610 = vld [vmem:[%s3 + $0xf8] sm:$0xff]
    %v611 = vld [vmem:[%s3 + $0x100] sm:$0xff]
    %v612 = vld [vmem:[%s3 + $0x108] sm:$0xff]
    %v613 = vld [vmem:[%s3 + $0x110] sm:$0xff]
    %v614 = vld [vmem:[%s3 + $0x118] sm:$0xff]
    %v615 = vld [vmem:[%s3 + $0x120] sm:$0xff]
    %v616 = vld [vmem:[%s3 + $0x128] sm:$0xff]
    %v617 = vld [vmem:[%s3 + $0x130] sm:$0xff]
    %v618 = vld [vmem:[%s3 + $0x138] sm:$0xff]
    %v619 = vld [vmem:[%s3 + $0x140] sm:$0xff]
    %v620 = vld [vmem:[%s3 + $0x148] sm:$0xff]
    %v621 = vld [vmem:[%s3 + $0x150] sm:$0xff]
    %v622 = vld [vmem:[%s3 + $0x158] sm:$0xff]
    %v623 = vld [vmem:[%s3 + $0x160] sm:$0xff]
    %v624 = vld [vmem:[%s3 + $0x168] sm:$0xff]
    %v625 = vld [vmem:[%s3 + $0x170] sm:$0xff]
    %v626 = vld [vmem:[%s3 + $0x178] sm:$0xff]
    %v627 = vld [vmem:[%s3 + $0x180] sm:$0xff]
    %v628 = vld [vmem:[%s3 + $0x188] sm:$0xff]
    %v629 = vld [vmem:[%s3 + $0x190] sm:$0xff]
    %v630 = vld [vmem:[%s3 + $0x198] sm:$0xff]
    %v631 = vld [vmem:[%s3 + $0x1a0] sm:$0xff]
    %v632 = vld [vmem:[%s3 + $0x1a8] sm:$0xff]
    %v633 = vld [vmem:[%s3 + $0x1b0] sm:$0xff]
    %v634 = vld [vmem:[%s3 + $0x1b8] sm:$0xff]
    %v635 = vld [vmem:[%s3 + $0x1c0] sm:$0xff]
    %v636 = vld [vmem:[%s3 + $0x1c8] sm:$0xff]
    %v637 = vld [vmem:[%s3 + $0x1d0] sm:$0xff]
    %v638 = vld [vmem:[%s3 + $0x1d8] sm:$0xff]
    %v639 = vld [vmem:[%s3 + $0x1e0] sm:$0xff]
    %v640 = vld [vmem:[%s3 + $0x1e8] sm:$0xff]
    %v641 = vld [vmem:[%s3 + $0x1f0] sm:$0xff]
    %v642 = vld [vmem:[%s3 + $0x1f8] sm:$0xff]
    %v643 = vld [vmem:[%s3 + $0x200] sm:$0xff]
    %v644 = vld [vmem:[%s3 + $0x208] sm:$0xff]
    %v645 = vld [vmem:[%s3 + $0x210] sm:$0xff]
    %v646 = vld [vmem:[%s3 + $0x218] sm:$0xff]
    %v647 = vld [vmem:[%s3 + $0x220] sm:$0xff]
    %v648 = vld [vmem:[%s3 + $0x228] sm:$0xff]
    %v649 = vld [vmem:[%s3 + $0x230] sm:$0xff]
    %v650 = vld [vmem:[%s3 + $0x238] sm:$0xff]
    %v651 = vld [vmem:[%s3 + $0x240] sm:$0xff]
    %v652 = vld [vmem:[%s3 + $0x248] sm:$0xff]
    %v653 = vld [vmem:[%s3 + $0x250] sm:$0xff]
    %v654 = vld [vmem:[%s3 + $0x258] sm:$0xff]
    %v655 = vld [vmem:[%s3 + $0x260] sm:$0xff]
    %v656 = vld [vmem:[%s3 + $0x268] sm:$0xff]
    %v657 = vld [vmem:[%s3 + $0x270] sm:$0xff]
    %v658 = vld [vmem:[%s3 + $0x278] sm:$0xff]
    %659 = vmatpush.msra.mxu0 %v594
    %660 = vmatpush.msra.mxu0 %v593
    %661 = vmatpush.msra.mxu0 %v592
    %662 = vmatpush.msra.mxu0 %v591
    %663 = vmatpush.msra.mxu0 %v590
    %664 = vmatpush.msra.mxu0 %v589
    %665 = vmatpush.msra.mxu0 %v588
    %666 = vmatpush.msra.mxu0 %v587
    %667 = vmatpush.msra.mxu0 %v586
    %668 = vmatpush.msra.mxu0 %v585
    %669 = vmatpush.msra.mxu0 %v584
    %670 = vmatpush.msra.mxu0 %v583
    %671 = vmatpush.msra.mxu0 %v582
    %672 = vmatpush.msra.mxu0 %v581
    %673 = vmatpush.msra.mxu0 %v580
    %674 = vmatpush.msra.mxu0 %v579
    %675 = vmatmul.f32.gmra.mxu0 %v539
    %v676 = vpop.f32.mrf.mxu0
    %v677 = vadd.f32 0.0, %v676
    %678 = vmatmul.f32.gmra.mxu0 %v540
    %v679 = vpop.f32.mrf.mxu0
    %v680 = vadd.f32 0.0, %v679
    %681 = vdwg.mxu0
    %682 = vmatpush.msra.mxu0 %v610
    %683 = vmatpush.msra.mxu0 %v609
    %684 = vmatpush.msra.mxu0 %v608
    %685 = vmatpush.msra.mxu0 %v607
    %686 = vmatpush.msra.mxu0 %v606
    %687 = vmatpush.msra.mxu0 %v605
    %688 = vmatpush.msra.mxu0 %v604
    %689 = vmatpush.msra.mxu0 %v603
    %690 = vmatpush.msra.mxu0 %v602
    %691 = vmatpush.msra.mxu0 %v601
    %692 = vmatpush.msra.mxu0 %v600
    %693 = vmatpush.msra.mxu0 %v599
    %694 = vmatpush.msra.mxu0 %v598
    %695 = vmatpush.msra.mxu0 %v597
    %696 = vmatpush.msra.mxu0 %v596
    %697 = vmatpush.msra.mxu0 %v595
    %698 = vmatmul.f32.gmra.mxu0 %v549
    %v699 = vpop.f32.mrf.mxu0
    %v700 = vadd.f32 %v677, %v699
    %701 = vmatmul.f32.gmra.mxu0 %v552
    %v702 = vpop.f32.mrf.mxu0
    %v703 = vadd.f32 %v680, %v702
    %704 = vdwg.mxu0
    %705 = vmatpush.msra.mxu0 %v626
    %706 = vmatpush.msra.mxu0 %v625
    %707 = vmatpush.msra.mxu0 %v624
    %708 = vmatpush.msra.mxu0 %v623
    %709 = vmatpush.msra.mxu0 %v622
    %710 = vmatpush.msra.mxu0 %v621
    %711 = vmatpush.msra.mxu0 %v620
    %712 = vmatpush.msra.mxu0 %v619
    %713 = vmatpush.msra.mxu0 %v618
    %714 = vmatpush.msra.mxu0 %v617
    %715 = vmatpush.msra.mxu0 %v616
    %716 = vmatpush.msra.mxu0 %v615
    %717 = vmatpush.msra.mxu0 %v614
    %718 = vmatpush.msra.mxu0 %v613
    %719 = vmatpush.msra.mxu0 %v612
    %720 = vmatpush.msra.mxu0 %v611
    %721 = vmatmul.f32.gmra.mxu0 %v557
    %v722 = vpop.f32.mrf.mxu0
    %v723 = vadd.f32 %v700, %v722
    %724 = vmatmul.f32.gmra.mxu0 %v560
    %v725 = vpop.f32.mrf.mxu0
    %v726 = vadd.f32 %v703, %v725
    %727 = vdwg.mxu0
    %728 = vmatpush.msra.mxu0 %v642
    %729 = vmatpush.msra.mxu0 %v641
    %730 = vmatpush.msra.mxu0 %v640
    %731 = vmatpush.msra.mxu0 %v639
    %732 = vmatpush.msra.mxu0 %v638
    %733 = vmatpush.msra.mxu0 %v637
    %734 = vmatpush.msra.mxu0 %v636
    %735 = vmatpush.msra.mxu0 %v635
    %736 = vmatpush.msra.mxu0 %v634
    %737 = vmatpush.msra.mxu0 %v633
    %738 = vmatpush.msra.mxu0 %v632
    %739 = vmatpush.msra.mxu0 %v631
    %740 = vmatpush.msra.mxu0 %v630
    %741 = vmatpush.msra.mxu0 %v629
    %742 = vmatpush.msra.mxu0 %v628
    %743 = vmatpush.msra.mxu0 %v627
    %744 = vmatmul.f32.gmra.mxu0 %v565
    %v745 = vpop.f32.mrf.mxu0
    %v746 = vadd.f32 %v723, %v745
    %747 = vmatmul.f32.gmra.mxu0 %v568
    %v748 = vpop.f32.mrf.mxu0
    %v749 = vadd.f32 %v726, %v748
    %750 = vdwg.mxu0
    %751 = vmatpush.msra.mxu0 %v658
    %752 = vmatpush.msra.mxu0 %v657
    %753 = vmatpush.msra.mxu0 %v656
    %754 = vmatpush.msra.mxu0 %v655
    %755 = vmatpush.msra.mxu0 %v654
    %756 = vmatpush.msra.mxu0 %v653
    %757 = vmatpush.msra.mxu0 %v652
    %758 = vmatpush.msra.mxu0 %v651
    %759 = vmatpush.msra.mxu0 %v650
    %760 = vmatpush.msra.mxu0 %v649
    %761 = vmatpush.msra.mxu0 %v648
    %762 = vmatpush.msra.mxu0 %v647
    %763 = vmatpush.msra.mxu0 %v646
    %764 = vmatpush.msra.mxu0 %v645
    %765 = vmatpush.msra.mxu0 %v644
    %766 = vmatpush.msra.mxu0 %v643
    %767 = vmatmul.f32.gmra.mxu0 %v573
    %v768 = vpop.f32.mrf.mxu0
    %v769 = vadd.f32 %v746, %v768
    %770 = vmatmul.f32.gmra.mxu0 %v576
    %v771 = vpop.f32.mrf.mxu0
    %v772 = vadd.f32 %v749, %v771
    %773 = vdwg.mxu0
    %v776 = vrot.slane %v769, 2
    %v777 = vrot.slane %v769, 4
    %v778 = vrot.slane %v769, 6
    %v779 = vrot.slane %v772, 2
    %v780 = vrot.slane %v772, 4
    %v781 = vrot.slane %v772, 6
    %v788 = vrot.slane %v769, 7
    %v789 = vrot.slane %v788, 2
    %v790 = vrot.slane %v776, 7
    %v791 = vrot.slane %v790, 2
    %v792 = vrot.slane %v777, 7
    %v793 = vrot.slane %v792, 2
    %v794 = vrot.slane %v778, 7
    %v795 = vrot.slane %v794, 2
    %v796 = vrot.slane %v772, 7
    %v797 = vrot.slane %v796, 2
    %v798 = vrot.slane %v779, 7
    %v799 = vrot.slane %v798, 2
    %v800 = vrot.slane %v780, 7
    %v801 = vrot.slane %v800, 2
    %v802 = vrot.slane %v781, 7
    %v803 = vrot.slane %v802, 2
    %v812 = vmax.f32 %v769, %v789
    %v813 = vmax.f32 %v776, %v791
    %v814 = vmax.f32 %v777, %v793
    %v815 = vmax.f32 %v778, %v795
    %v816 = vmax.f32 %v772, %v797
    %v817 = vmax.f32 %v779, %v799
    %v818 = vmax.f32 %v780, %v801
    %v819 = vmax.f32 %v781, %v803
    %828 = vrot.lane.b32.xlu0 %v812, 96
    %v829 = vpop.permute.xlu0 %828
    %830 = vrot.lane.b32.xlu0 %v813, 96
    %v831 = vpop.permute.xlu0 %830
    %832 = vrot.lane.b32.xlu0 %v814, 96
    %v833 = vpop.permute.xlu0 %832
    %834 = vrot.lane.b32.xlu0 %v815, 96
    %v835 = vpop.permute.xlu0 %834
    %836 = vrot.lane.b32.xlu0 %v816, 96
    %v837 = vpop.permute.xlu0 %836
    %838 = vrot.lane.b32.xlu0 %v817, 96
    %v839 = vpop.permute.xlu0 %838
    %840 = vrot.lane.b32.xlu0 %v818, 96
    %v841 = vpop.permute.xlu0 %840
    %842 = vrot.lane.b32.xlu0 %v819, 96
    %v843 = vpop.permute.xlu0 %842
    %v852 = vmax.f32 %v812, %v829
    %v853 = vmax.f32 %v813, %v831
    %v854 = vmax.f32 %v814, %v833
    %v855 = vmax.f32 %v815, %v835
    %v856 = vmax.f32 %v816, %v837
    %v857 = vmax.f32 %v817, %v839
    %v858 = vmax.f32 %v818, %v841
    %v859 = vmax.f32 %v819, %v843
    %v860 = vld [vmem:[%s4] sm:$0x1]
    %v862 = vperm.slane %v860, 0
    %v863 = vrot.slane %v862, 2
    %v864 = vrot.slane %v862, 4
    %v865 = vrot.slane %v862, 6
    %v866 = vrot.slane %v862, 1
    %v867 = vrot.slane %v863, 1
    %v868 = vrot.slane %v864, 1
    %v869 = vrot.slane %v865, 1
    %v878 = vadd.f32 %v852, %v862
    %v879 = vadd.f32 %v853, %v866
    %v880 = vadd.f32 %v854, %v863
    %v881 = vadd.f32 %v855, %v867
    %v882 = vadd.f32 %v856, %v864
    %v883 = vadd.f32 %v857, %v868
    %v884 = vadd.f32 %v858, %v865
    %v885 = vadd.f32 %v859, %v869
    %v886 = vmax.f32 %v878, 0.0
    %v887 = vmax.f32 %v879, 0.0
    %v888 = vmax.f32 %v880, 0.0
    %v889 = vmax.f32 %v881, 0.0
    %v890 = vmax.f32 %v882, 0.0
    %v891 = vmax.f32 %v883, 0.0
    %v892 = vmax.f32 %v884, 0.0
    %v893 = vmax.f32 %v885, 0.0
    %v896 = vperm.slane %v886, 0
    %v897 = vperm.slane %v890, 0
    %v898 = vsel %vm527, %v897, %v896
    %v902 = vperm.slane %v887, 0
    %v903 = vperm.slane %v891, 0
    %v904 = vsel %vm527, %v903, %v902
    %905 = vrot.lane.b32.xlu0 %v904, 32
    %v906 = vpop.permute.xlu0 %905
    %v910 = vperm.slane %v888, 0
    %v911 = vperm.slane %v892, 0
    %v912 = vsel %vm527, %v911, %v910
    %913 = vrot.lane.b32.xlu0 %v912, 64
    %v914 = vpop.permute.xlu0 %913
    %v918 = vperm.slane %v889, 0
    %v919 = vperm.slane %v893, 0
    %v920 = vsel %vm527, %v919, %v918
    %921 = vrot.lane.b32.xlu0 %v920, 96
    %v922 = vpop.permute.xlu0 %921
    %vm924 = vcmask 261120
    %v925 = vsel %vm924, %v898, %v906
    %vm926 = vcmask 523264
    %v927 = vsel %vm926, %v925, %v914
    %vm928 = vcmask 785408
    %v929 = vsel %vm928, %v927, %v922
    %930 = vst [vmem:[#allocation2] sm:$0x3] %v929
    // Predicated region
    $region22: #{tpu_custom_call.1} parent=1 // pred_check
      _
    $region23: #{tpu_custom_call.1} parent=1 // pred_check_branch
      %932 = sbr.rel (0) target = $region25
    $region24: #{tpu_custom_call.1} parent=1 // pred_region
      %934 = vsyncadd [#allocation3], 0
      %s936 = sshll.u32 [#allocation2], 4
      %s937 = int_to_ptr.vmem [resolvable:$true] %s936
      %s938 = sshll.u32 %s5, 4
      %s939 = int_to_ptr.hbm [resolvable:$true] %s938
      %941 = dma.vmem_to_hbm [thread:$0]  %s937, 32, %s939, [#allocation3]
    $region25: #{tpu_custom_call.1} parent=1 // pred_fallthru
      _
    // Predicated region
    $region26: #{tpu_custom_call.1} parent=1 // pred_check
      _
    $region27: #{tpu_custom_call.1} parent=1 // pred_check_branch
      %943 = sbr.rel (0) target = $region29
    $region28: #{tpu_custom_call.1} parent=1 // pred_region
      %945 = dma.done [#allocation3], 32
    $region29: #{tpu_custom_call.1} parent=1 // pred_fallthru
      _
    %946 = vsyncpa [#allocation3], 1

</llo_original>
